<compile_context>
chip_gen: v5e
topology: v5e:2x2
jax: 0.10.0
libtpu: 0.0.40
codegen_flags: <defaults>
</compile_context>

<pallas_src>
import functools
import math

import jax
import jax.numpy as jnp
from jax import lax
from jax.experimental import pallas as pl
from jax.experimental.pallas import tpu as pltpu

EPS = 1e-5
VMEM_LIMIT = 48 * 1024 * 1024   # fits v5e/v6e (128 MiB) and v7x (64 MiB physical) VMEM
LANE = 128
SUBLANE = 8


def _round_up(x, m):
    return ((x + m - 1) // m) * m


def _pick_row_tile(N, H, W):
    """Rows of the low-res input processed per grid step (must divide H)."""
    divs = [d for d in range(1, H + 1) if H % d == 0]
    ok = [d for d in divs if (d * W) % SUBLANE == 0]
    if not ok:
        return H  # single tile per image: block dim equals full dim -> always legal
    fit = [d for d in ok if d * W <= 1024] or [ok[0]]
    th = max(fit)
    # keep the total grid >= 2 steps so both v7x TensorCores get work
    if N * (H // th) < 2:
        smaller = [d for d in ok if H // d >= 2]
        if smaller:
            th = max(smaller)
    return th


def _conv_stats_kernel(x_ref, w_ref, y_ref, psum_ref, pssq_ref, *, tm, width, ncols):
    """Sub-pixel transposed-conv matmul: 3 accumulating dots (one per kernel-row tap,
    K = 3*Cin each) + per-tile per-column sum / sum-of-squares for the BN statistics."""
    r = pl.program_id(1)
    base = r * tm
    if tm % SUBLANE == 0:
        base = pl.multiple_of(base, SUBLANE)

    acc = jnp.zeros((tm, ncols), jnp.float32)
    for dy in range(3):                                   # static unroll; K tiled by tap
        patch = x_ref[0, pl.ds(base + dy * width, tm), :]  # (tm, 3*Cin) bf16
        acc = acc + jnp.dot(patch, w_ref[dy], preferred_element_type=jnp.float32)

    y_ref[0] = acc.astype(y_ref.dtype)                    # bf16 intermediate (half the HBM)
    s = jnp.sum(acc, axis=0, keepdims=True)               # f32 partials, reduced in JAX
    q = jnp.sum(acc * acc, axis=0, keepdims=True)
    # 8 identical sublane rows -> (8, Ncols) block is layout-legal for any tile count.
    psum_ref[0] = jnp.broadcast_to(s, (SUBLANE, ncols))
    pssq_ref[0] = jnp.broadcast_to(q, (SUBLANE, ncols))


def _bn_relu_kernel(y_ref, scale_ref, shift_ref, o_ref):
    """Fused batch-norm apply + ReLU (f32 elementwise math; bf16 store)."""
    y = y_ref[0].astype(jnp.float32)
    o_ref[0] = jnp.maximum(y * scale_ref[...] + shift_ref[...], 0.0).astype(o_ref.dtype)


def up_forward(x1, x2, w_t, bias, gamma, beta, *, row_tile=None):
    """x1: (N, Cin, H, W) NCHW; x2: (N, C2, 2H, 2W) NCHW -> (N, Cout+C2, 2H, 2W)."""
    del bias  # cancels exactly under training-mode BatchNorm (batch-mean subtraction)

    N, Cin, H, W = x1.shape
    Cout = w_t.shape[1]
    Ho, Wo = 2 * H, 2 * W
    Coutp = _round_up(Cout, LANE // 4)     # lane-dense: Ncols = 4*Coutp is a 128 multiple
    Ncols = 4 * Coutp
    K3 = 3 * Cin

    th = row_tile if row_tile is not None else _pick_row_tile(N, H, W)
    assert H % th == 0, f"row_tile {th} must divide H={H}"
    R = H // th
    tm = th * W                            # matmul rows per grid step
    Mimg = (H + 2) * W                     # flattened rows of one column-expanded image

    # ---- column-tap pre-expansion (cheap XLA pass over the SMALL input, bf16) ----
    # xcol[n, hp, x, dx*Cin + c] = x_pad[n, hp, x + dx, c];  row taps stay in-kernel.
    x = jnp.transpose(x1, (0, 2, 3, 1)).astype(jnp.bfloat16)        # NHWC bf16
    x_pad = jnp.pad(x, ((0, 0), (1, 1), (1, 1), (0, 0)))            # (N, H+2, W+2, Cin)
    xcol = jnp.concatenate([x_pad[:, :, dx:dx + W, :] for dx in range(3)], axis=-1)
    xflat = xcol.reshape(N, Mimg, K3)                               # row = hp*W + x

    # ---- phase-grouped effective weight: (3 [dy], 3*Cin [(dx, ci)], 4*Coutp [(py,px,co)]) ----
    # output (2*ty+py, 2*tx+px) uses padded-input row ty+dy with kernel row kh = py+3-2*dy
    # (valid taps only); same along columns.  Unused taps / padded channels are zero.
    def tap(dy, dx, py, px):
        kh = py + 3 - 2 * dy
        kw = px + 3 - 2 * dx
        if 0 <= kh <= 3 and 0 <= kw <= 3:
            return w_t[:, :, kh, kw]                                # (Cin, Cout)
        return jnp.zeros((Cin, Cout), w_t.dtype)

    w_eff = jnp.stack(
        [jnp.stack([tap(dy, dx, py, px) for py in range(2) for px in range(2)], axis=1)
         for dy in range(3) for dx in range(3)], axis=0)            # (9, Cin, 4, Cout)
    w_eff = jnp.pad(w_eff, ((0, 0), (0, 0), (0, 0), (0, Coutp - Cout)))
    w_mat = w_eff.reshape(3, K3, Ncols).astype(jnp.bfloat16)

    # big-spatial images: drop to a single input buffer instead of shrinking the tile
    img_bytes = Mimg * K3 * 2
    x_spec_kwargs = dict(pipeline_mode=pl.Buffered(1)) if img_bytes > (8 << 20) else {}

    # ---- pass 1: conv matmul -> y (bf16) + per-tile channel statistics ----
    y_bf, psum, pssq = pl.pallas_call(
        functools.partial(_conv_stats_kernel, tm=tm, width=W, ncols=Ncols),
        out_shape=(
            jax.ShapeDtypeStruct((N, H * W, Ncols), jnp.bfloat16),
            jax.ShapeDtypeStruct((N, R * SUBLANE, Ncols), jnp.float32),
            jax.ShapeDtypeStruct((N, R * SUBLANE, Ncols), jnp.float32),
        ),
        grid_spec=pltpu.PrefetchScalarGridSpec(
            num_scalar_prefetch=0,
            grid=(N, R),
            in_specs=[
                # full (column-expanded) image per batch element; revisited across r.
                pl.BlockSpec((1, Mimg, K3), lambda n, r: (n, 0, 0), **x_spec_kwargs),
                # weight: constant index map -> single resident VMEM buffer.
                pl.BlockSpec((3, K3, Ncols), lambda n, r: (0, 0, 0),
                             pipeline_mode=pl.Buffered(1)),
            ],
            out_specs=(
                pl.BlockSpec((1, tm, Ncols), lambda n, r: (n, r, 0)),
                pl.BlockSpec((1, SUBLANE, Ncols), lambda n, r: (n, r, 0)),
                pl.BlockSpec((1, SUBLANE, Ncols), lambda n, r: (n, r, 0)),
            ),
        ),
        compiler_params=pltpu.CompilerParams(
            dimension_semantics=("parallel", "parallel"),
            vmem_limit_bytes=VMEM_LIMIT),
    )(xflat, w_mat)

    # ---- tiny glue: fold batch stats (biased variance) into per-channel scale/shift ----
    count = jnp.float32(N * Ho * Wo)                                # = 4 * N * H * W pixels
    s = (jnp.sum(psum, axis=(0, 1)) * (1.0 / SUBLANE)).reshape(4, Coutp).sum(axis=0)
    q = (jnp.sum(pssq, axis=(0, 1)) * (1.0 / SUBLANE)).reshape(4, Coutp).sum(axis=0)
    mean = s / count
    var = jnp.maximum(q / count - mean * mean, 0.0)                 # clamp guards cancellation
    inv = lax.rsqrt(var + EPS)
    gamma_p = jnp.pad(gamma.astype(jnp.float32), (0, Coutp - Cout))
    beta_p = jnp.pad(beta.astype(jnp.float32), (0, Coutp - Cout))
    scale_c = gamma_p * inv
    shift_c = beta_p - mean * scale_c
    scale = jnp.tile(scale_c, 4).reshape(1, Ncols)                  # per-phase column broadcast
    shift = jnp.tile(shift_c, 4).reshape(1, Ncols)

    # ---- pass 2: fused BN apply + ReLU (bf16 store) ----
    y_act = pl.pallas_call(
        _bn_relu_kernel,
        out_shape=jax.ShapeDtypeStruct((N, H * W, Ncols), jnp.bfloat16),
        grid_spec=pltpu.PrefetchScalarGridSpec(
            num_scalar_prefetch=0,
            grid=(N, R),
            in_specs=[
                pl.BlockSpec((1, tm, Ncols), lambda n, r: (n, r, 0)),
                pl.BlockSpec((1, Ncols), lambda n, r: (0, 0)),
                pl.BlockSpec((1, Ncols), lambda n, r: (0, 0)),
            ],
            out_specs=pl.BlockSpec((1, tm, Ncols), lambda n, r: (n, r, 0)),
        ),
        compiler_params=pltpu.CompilerParams(
            dimension_semantics=("parallel", "parallel"),
            vmem_limit_bytes=VMEM_LIMIT),
    )(y_bf, scale, shift)

    # ---- depth-to-space back to NCHW + concat (bf16 until the final concat/cast) ----
    y_act = y_act.reshape(N, H, W, 2, 2, Coutp)[..., :Cout]         # (n, h, x, py, px, co)
    x1_out = jnp.transpose(y_act, (0, 5, 1, 3, 2, 4)).reshape(N, Cout, Ho, Wo)
    return jnp.concatenate([x1_out.astype(x2.dtype), x2], axis=1)


def up_reference(x1, x2, w_t, bias, gamma, beta):
    """Pure-JAX reference reproducing the PyTorch forward (training-mode BN)."""
    Cout = w_t.shape[1]
    w_conv = jnp.transpose(jnp.flip(w_t, (2, 3)), (1, 0, 2, 3))
    y = lax.conv_general_dilated(
        x1, w_conv, window_strides=(1, 1), padding=[(2, 2), (2, 2)],
        lhs_dilation=(2, 2), dimension_numbers=("NCHW", "OIHW", "NCHW"))
    y = y + bias.reshape(1, Cout, 1, 1)
    mean = jnp.mean(y, axis=(0, 2, 3), keepdims=True)
    var = jnp.mean((y - mean) ** 2, axis=(0, 2, 3), keepdims=True)
    y = (y - mean) * lax.rsqrt(var + EPS)
    y = y * gamma.reshape(1, Cout, 1, 1) + beta.reshape(1, Cout, 1, 1)
    y = jnp.maximum(y, 0.0)
    return jnp.concatenate([y, x2], axis=1)


if __name__ == "__main__":
    key = jax.random.PRNGKey(0)
    k1, k2, k3, k4 = jax.random.split(key, 4)

    # Small but non-trivial: Cout=8 is NOT a multiple of 32 (exercises the channel
    # padding path), N=2 feeds both v7x cores, and row_tile=4 exercises a multi-tile
    # grid with revisited input blocks and multi-block stats partials.
    N, Cin, Cout, H, W = 2, 8, 8, 16, 16
    x1 = jax.random.normal(k1, (N, Cin, H, W), jnp.float32)
    x2 = jax.random.normal(k2, (N, Cout, 2 * H, 2 * W), jnp.float32)

    # deterministic parameters: ConvTranspose2d weight (in, out, 4, 4), bias, BN affine
    w_t = jax.random.normal(k3, (Cin, Cout, 4, 4), jnp.float32) / math.sqrt(Cin * 16)
    bias = 0.1 * jax.random.normal(k4, (Cout,), jnp.float32)
    gamma = jnp.linspace(0.5, 1.5, Cout).astype(jnp.float32)
    beta = jnp.linspace(-0.2, 0.2, Cout).astype(jnp.float32)

    ref = jax.block_until_ready(up_reference(x1, x2, w_t, bias, gamma, beta))

    for rt in (None, 4):    # default tiling (1 row tile/image) and multi-tile grid
        out = jax.block_until_ready(
            up_forward(x1, x2, w_t, bias, gamma, beta, row_tile=rt))
        assert out.shape == (N, 2 * Cout, 2 * H, 2 * W), out.shape
        err = float(jnp.max(jnp.abs(out - ref)))
        assert jnp.allclose(out, ref, atol=5e-2, rtol=5e-2), \
            f"row_tile={rt}: max abs err = {err}"

    print("KERNEL_OK")
</pallas_src>

<mosaic_0001>
module attributes {stable_mosaic.version = 11 : i64} {
  func.func @_conv_stats_kernel(%arg0: i32, %arg1: i32, %arg2: memref<1x288x24xbf16, #tpu.memory_space<vmem>>, %arg3: memref<3x24x128xbf16, #tpu.memory_space<vmem>>, %arg4: memref<1x256x128xbf16, #tpu.memory_space<vmem>>, %arg5: memref<1x8x128xf32, #tpu.memory_space<vmem>>, %arg6: memref<1x8x128xf32, #tpu.memory_space<vmem>>) attributes {dimension_semantics = [#tpu.dimension_semantics<parallel>, #tpu.dimension_semantics<parallel>], iteration_bounds = array<i64: 2, 1>, scalar_prefetch = 0 : i64, scratch_operands = 0 : i64, tpu.core_type = #tpu.core_type<tc>, window_params = [{transform_indices = @transform_0, window_bounds = array<i64: 1, 288, 24>}, {pipeline_mode = #tpu.pipeline_mode<synchronous>, transform_indices = @transform_1, window_bounds = array<i64: 3, 24, 128>}, {transform_indices = @transform_2, window_bounds = array<i64: 1, 256, 128>}, {transform_indices = @transform_3, window_bounds = array<i64: 1, 8, 128>}, {transform_indices = @transform_4, window_bounds = array<i64: 1, 8, 128>}]} {
    %c256_i32 = arith.constant 256 : i32
    %0 = arith.muli %arg1, %c256_i32 : i32
    %1 = tpu.assume_multiple %0, 8 : i32
    %cst = arith.constant 0.000000e+00 : f32
    %2 = vector.broadcast %cst : f32 to vector<256x128xf32>
    %c0_i32 = arith.constant 0 : i32
    %3 = arith.addi %1, %c0_i32 : i32
    %c0 = arith.constant 0 : index
    %4 = arith.index_cast %3 : i32 to index
    %c0_0 = arith.constant 0 : index
    %5 = vector.load %arg2[%c0, %4, %c0_0] : memref<1x288x24xbf16, #tpu.memory_space<vmem>>, vector<1x256x24xbf16>
    %6 = vector.shape_cast %5 : vector<1x256x24xbf16> to vector<256x24xbf16>
    %c0_1 = arith.constant 0 : index
    %c0_2 = arith.constant 0 : index
    %c0_3 = arith.constant 0 : index
    %7 = vector.load %arg3[%c0_1, %c0_2, %c0_3] : memref<3x24x128xbf16, #tpu.memory_space<vmem>>, vector<1x24x128xbf16>
    %8 = vector.shape_cast %7 : vector<1x24x128xbf16> to vector<24x128xbf16>
    %cst_4 = arith.constant dense<0.000000e+00> : vector<256x128xf32>
    %9 = tpu.matmul %6, %8, %cst_4 {dimension_numbers = #tpu.dot_dimension_numbers<[1], [0], [0], [1], [0, 0, 1, 1], [], []>} : vector<256x24xbf16>, vector<24x128xbf16>, vector<256x128xf32> -> vector<256x128xf32>
    %10 = arith.addf %2, %9 : vector<256x128xf32>
    %c16_i32 = arith.constant 16 : i32
    %11 = arith.addi %1, %c16_i32 : i32
    %c0_5 = arith.constant 0 : index
    %12 = arith.index_cast %11 : i32 to index
    %c0_6 = arith.constant 0 : index
    %13 = vector.load %arg2[%c0_5, %12, %c0_6] : memref<1x288x24xbf16, #tpu.memory_space<vmem>>, vector<1x256x24xbf16>
    %14 = vector.shape_cast %13 : vector<1x256x24xbf16> to vector<256x24xbf16>
    %c1 = arith.constant 1 : index
    %c0_7 = arith.constant 0 : index
    %c0_8 = arith.constant 0 : index
    %15 = vector.load %arg3[%c1, %c0_7, %c0_8] : memref<3x24x128xbf16, #tpu.memory_space<vmem>>, vector<1x24x128xbf16>
    %16 = vector.shape_cast %15 : vector<1x24x128xbf16> to vector<24x128xbf16>
    %cst_9 = arith.constant dense<0.000000e+00> : vector<256x128xf32>
    %17 = tpu.matmul %14, %16, %cst_9 {dimension_numbers = #tpu.dot_dimension_numbers<[1], [0], [0], [1], [0, 0, 1, 1], [], []>} : vector<256x24xbf16>, vector<24x128xbf16>, vector<256x128xf32> -> vector<256x128xf32>
    %18 = arith.addf %10, %17 : vector<256x128xf32>
    %c32_i32 = arith.constant 32 : i32
    %19 = arith.addi %1, %c32_i32 : i32
    %c0_10 = arith.constant 0 : index
    %20 = arith.index_cast %19 : i32 to index
    %c0_11 = arith.constant 0 : index
    %21 = vector.load %arg2[%c0_10, %20, %c0_11] : memref<1x288x24xbf16, #tpu.memory_space<vmem>>, vector<1x256x24xbf16>
    %22 = vector.shape_cast %21 : vector<1x256x24xbf16> to vector<256x24xbf16>
    %c2 = arith.constant 2 : index
    %c0_12 = arith.constant 0 : index
    %c0_13 = arith.constant 0 : index
    %23 = vector.load %arg3[%c2, %c0_12, %c0_13] : memref<3x24x128xbf16, #tpu.memory_space<vmem>>, vector<1x24x128xbf16>
    %24 = vector.shape_cast %23 : vector<1x24x128xbf16> to vector<24x128xbf16>
    %cst_14 = arith.constant dense<0.000000e+00> : vector<256x128xf32>
    %25 = tpu.matmul %22, %24, %cst_14 {dimension_numbers = #tpu.dot_dimension_numbers<[1], [0], [0], [1], [0, 0, 1, 1], [], []>} : vector<256x24xbf16>, vector<24x128xbf16>, vector<256x128xf32> -> vector<256x128xf32>
    %26 = arith.addf %18, %25 : vector<256x128xf32>
    %27 = arith.truncf %26 : vector<256x128xf32> to vector<256x128xbf16>
    %c0_15 = arith.constant 0 : index
    %c0_16 = arith.constant 0 : index
    %c0_17 = arith.constant 0 : index
    %28 = vector.load %arg4[%c0_15, %c0_16, %c0_17] : memref<1x256x128xbf16, #tpu.memory_space<vmem>>, vector<1x256x128xbf16>
    %29 = vector.shape_cast %28 : vector<1x256x128xbf16> to vector<256x128xbf16>
    %30 = vector.shape_cast %27 : vector<256x128xbf16> to vector<1x256x128xbf16>
    tpu.vector_store %arg4[%c0_15, %c0_16, %c0_17], %30 {strides = array<i32>} : memref<1x256x128xbf16, #tpu.memory_space<vmem>>, vector<1x256x128xbf16>,
    %cst_18 = arith.constant dense<0.000000e+00> : vector<128xf32>
    %31 = vector.multi_reduction <add>, %26, %cst_18 [0] : vector<256x128xf32> to vector<128xf32>
    %32 = vector.shape_cast %31 : vector<128xf32> to vector<1x128xf32>
    %33 = arith.mulf %26, %26 : vector<256x128xf32>
    %cst_19 = arith.constant dense<0.000000e+00> : vector<128xf32>
    %34 = vector.multi_reduction <add>, %33, %cst_19 [0] : vector<256x128xf32> to vector<128xf32>
    %35 = vector.shape_cast %34 : vector<128xf32> to vector<1x128xf32>
    %36 = vector.shape_cast %32 : vector<1x128xf32> to vector<1x128xf32>
    %37 = vector.broadcast %36 : vector<1x128xf32> to vector<8x128xf32>
    %c0_20 = arith.constant 0 : index
    %c0_21 = arith.constant 0 : index
    %c0_22 = arith.constant 0 : index
    %38 = vector.load %arg5[%c0_20, %c0_21, %c0_22] : memref<1x8x128xf32, #tpu.memory_space<vmem>>, vector<1x8x128xf32>
    %39 = vector.shape_cast %38 : vector<1x8x128xf32> to vector<8x128xf32>
    %40 = vector.shape_cast %37 : vector<8x128xf32> to vector<1x8x128xf32>
    tpu.vector_store %arg5[%c0_20, %c0_21, %c0_22], %40 {strides = array<i32>} : memref<1x8x128xf32, #tpu.memory_space<vmem>>, vector<1x8x128xf32>,
    %41 = vector.shape_cast %35 : vector<1x128xf32> to vector<1x128xf32>
    %42 = vector.broadcast %41 : vector<1x128xf32> to vector<8x128xf32>
    %c0_23 = arith.constant 0 : index
    %c0_24 = arith.constant 0 : index
    %c0_25 = arith.constant 0 : index
    %43 = vector.load %arg6[%c0_23, %c0_24, %c0_25] : memref<1x8x128xf32, #tpu.memory_space<vmem>>, vector<1x8x128xf32>
    %44 = vector.shape_cast %43 : vector<1x8x128xf32> to vector<8x128xf32>
    %45 = vector.shape_cast %42 : vector<8x128xf32> to vector<1x8x128xf32>
    tpu.vector_store %arg6[%c0_23, %c0_24, %c0_25], %45 {strides = array<i32>} : memref<1x8x128xf32, #tpu.memory_space<vmem>>, vector<1x8x128xf32>,
    return
  }
  func.func @transform_0(%arg0: i32, %arg1: i32) -> (i32, i32, i32) {
    %c0_i32 = arith.constant 0 : i32
    %c0_i32_0 = arith.constant 0 : i32
    %c0_i32_1 = arith.constant 0 : i32
    return %arg0, %c0_i32, %c0_i32_0 : i32, i32, i32
  }
  func.func @transform_1(%arg0: i32, %arg1: i32) -> (i32, i32, i32) {
    %c0_i32 = arith.constant 0 : i32
    %c0_i32_0 = arith.constant 0 : i32
    %c0_i32_1 = arith.constant 0 : i32
    %c0_i32_2 = arith.constant 0 : i32
    return %c0_i32, %c0_i32_0, %c0_i32_1 : i32, i32, i32
  }
  func.func @transform_2(%arg0: i32, %arg1: i32) -> (i32, i32, i32) {
    %c0_i32 = arith.constant 0 : i32
    %c0_i32_0 = arith.constant 0 : i32
    return %arg0, %arg1, %c0_i32 : i32, i32, i32
  }
  func.func @transform_3(%arg0: i32, %arg1: i32) -> (i32, i32, i32) {
    %c0_i32 = arith.constant 0 : i32
    %c0_i32_0 = arith.constant 0 : i32
    return %arg0, %arg1, %c0_i32 : i32, i32, i32
  }
  func.func @transform_4(%arg0: i32, %arg1: i32) -> (i32, i32, i32) {
    %c0_i32 = arith.constant 0 : i32
    %c0_i32_0 = arith.constant 0 : i32
    return %arg0, %arg1, %c0_i32 : i32, i32, i32
  }
}

</mosaic_0001>

<llo_original>
// kernel: tpu_custom_call.1
$region0: #{tpu_custom_call.1}
  #allocation0 [shape = 'u32[]', space=smem, size = 0x4, offset = 0x4, fixed_abs, tag = 'smem constant byte address 0x4 - core index']
  #allocation1 [shape = 'u32[72,128]{1,0:T(1,128)}', space=vmem, size = 0x9000, scoped, tag = 'internal scratch']
  %s0 = inlined_call_operand.vmem [shape: bf16[2,288,24], index: 0, kind: input, shape index: {}]
  %s1 = inlined_call_operand.vmem [shape: bf16[3,24,128], index: 1, kind: input, shape index: {}]
  %s2 = inlined_call_operand.hbm [shape: bf16[2,256,128], index: 2, kind: output, shape index: {0}]
  %s3 = inlined_call_operand.hbm [shape: f32[2,8,128], index: 3, kind: output, shape index: {1}]
  %s4 = inlined_call_operand.hbm [shape: f32[2,8,128], index: 4, kind: output, shape index: {2}]
  %5 = xla_tuple %s2, %s3, %s4
  %s6 = sld [smem:[#allocation0]]
  $region57: #{tpu_custom_call.1} parent=0
    _
  %s8 = ssub.s32 1, %s6
  %s9 = scalar_select 0, %s8, %s6
  $region1: #{tpu_custom_call.1} parent=0
    #allocation2 [shape = 'u8[131072]{0}', space=vmem, size = 0x20000, scoped, tag = 'output window, operand 0']
    #allocation3 [shape = 's32[2]{0}', space=sflag, size = 0x8, scoped, tag = 'scoped memory for tpu_custom_call.1']
    #allocation4 [shape = 'u8[8192]{0}', space=vmem, size = 0x2000, scoped, tag = 'output window, operand 1']
    #allocation5 [shape = 's32[2]{0}', space=sflag, size = 0x8, scoped, tag = 'scoped memory for tpu_custom_call.1']
    #allocation6 [shape = 'u8[8192]{0}', space=vmem, size = 0x2000, scoped, tag = 'output window, operand 2']
    %10 = vsyncpa [#allocation3], 0
    %s11 = scalar_lea.sflag [#allocation3], 1
    %12 = vsyncpa %s11, 0
    %13 = vsyncpa [#allocation5], 0
    %s14 = scalar_lea.sflag [#allocation5], 1
    %15 = vsyncpa %s14, 0
    loop: start=0, step=1, limit=4
    $region2: #{tpu_custom_call.1} parent=1 // loop_pre_header
      _
    $region3: #{tpu_custom_call.1} parent=1 // loop_header
      %s17 = sphi 0, %s21
      %p18 = scmp.ge.s32.totalorder %s17, 4
      %s24 = sphi 0, %s36
      %s25 = sphi 0, %s32
      %s26 = sphi 0, %s24
      %s27 = sphi 0, %s25
      %s28 = sphi 0, %s26
      %s29 = sphi 0, %s27
      %s39 = sphi 0, %s41
      %s42 = sphi 0, %s39
      %s43 = sphi 0, %s42
      %s59 = sphi 0, %s43
      %s63 = sphi 0, %s63
      %s65 = sphi 0, %s63
      %s66 = sphi 0, %s65
      %s80 = sphi 0, %s66
      %s88 = sphi 0, %s90
      %s91 = sphi 0, %s88
      %s92 = sphi 0, %s91
      %s108 = sphi 0, %s92
      %s116 = sphi 0, %s118
      %s119 = sphi 0, %s116
      %s120 = sphi 0, %s119
      %s136 = sphi 0, %s120
      %s144 = sphi 0, %s146
      %s147 = sphi 0, %s144
      %s148 = sphi 0, %s147
      %s164 = sphi 0, %s148
    $region4: #{tpu_custom_call.1} parent=1 // loop_header_branch
      %20 = sbr.rel (%p18) target = $region8
    $region5: #{tpu_custom_call.1} parent=1 // loop_body
      %s22 = ssub.s32 %s17, 1
      %s23 = ssub.s32 %s17, 2
      %s30 = sadd.s32 1, %s25
      %p31 = scmp.ge.s32.totalorder %s30, 1
      %s32 = scalar_select %p31, 0, %s30
      %s33 = sadd.s32 1, %s24
      %s34 = scalar_select %p31, %s33, %s24
      %p35 = scmp.ge.s32.totalorder %s34, 2
      %s36 = scalar_select %p35, 0, %s34
      %s37 = ssub.s32 %s24, %s36
      %p38 = scmp.eq.s32.totalorder %s37, 0
      %s40 = sadd.s32 %s39, 1
      %s41 = scalar_select %p38, %s39, %s40
      %p44 = pneg %p38
      %p45 = scmp.eq.s32.totalorder %s17, 1
      %p46 = por %p44, %p45
      %p47 = scmp.ne.s32.totalorder %s39, %s42
      %p48 = scmp.eq.s32.totalorder %s17, 0
      %p49 = por %p47, %p48
      %p50 = scmp.ne.s32.totalorder %s39, %s42
      %p51 = scmp.eq.s32.totalorder %s22, 1
      %p52 = por %p50, %p51
      %p53 = scmp.ne.s32.totalorder %s42, %s43
      %p54 = scmp.eq.s32.totalorder %s22, 0
      %p55 = por %p53, %p54
      %p56 = scmp.ne.s32.totalorder %s42, %s43
      %p57 = scmp.eq.s32.totalorder %s23, 1
      %p58 = por %p56, %p57
      %p60 = scmp.ne.s32.totalorder %s43, %s59
      %p61 = scmp.eq.s32.totalorder %s23, 0
      %p62 = por %p60, %p61
      %s64 = sadd.s32 %s63, 1
      %p67 = scmp.eq.s32.totalorder %s17, 1
      %p68 = scmp.ne.s32.totalorder %s63, %s65
      %p69 = scmp.eq.s32.totalorder %s17, 0
      %p70 = por %p68, %p69
      %p71 = scmp.ne.s32.totalorder %s63, %s65
      %p72 = scmp.eq.s32.totalorder %s22, 1
      %p73 = por %p71, %p72
      %p74 = scmp.ne.s32.totalorder %s65, %s66
      %p75 = scmp.eq.s32.totalorder %s22, 0
      %p76 = por %p74, %p75
      %p77 = scmp.ne.s32.totalorder %s65, %s66
      %p78 = scmp.eq.s32.totalorder %s23, 1
      %p79 = por %p77, %p78
      %p81 = scmp.ne.s32.totalorder %s66, %s80
      %p82 = scmp.eq.s32.totalorder %s23, 0
      %p83 = por %p81, %p82
      %s84 = ssub.s32 %s24, %s36
      %s85 = ssub.s32 %s25, %s32
      %s86 = sor.u32 %s84, %s85
      %p87 = scmp.eq.s32.totalorder %s86, 0
      %s89 = sadd.s32 %s88, 1
      %s90 = scalar_select %p87, %s88, %s89
      %p93 = pneg %p87
      %p94 = scmp.eq.s32.totalorder %s17, 1
      %p95 = por %p93, %p94
      %p96 = scmp.ne.s32.totalorder %s88, %s91
      %p97 = scmp.eq.s32.totalorder %s17, 0
      %p98 = por %p96, %p97
      %p99 = scmp.ne.s32.totalorder %s88, %s91
      %p100 = scmp.eq.s32.totalorder %s22, 1
      %p101 = por %p99, %p100
      %p102 = scmp.ne.s32.totalorder %s91, %s92
      %p103 = scmp.eq.s32.totalorder %s22, 0
      %p104 = por %p102, %p103
      %p105 = scmp.ne.s32.totalorder %s91, %s92
      %p106 = scmp.eq.s32.totalorder %s23, 1
      %p107 = por %p105, %p106
      %p109 = scmp.ne.s32.totalorder %s92, %s108
      %p110 = scmp.eq.s32.totalorder %s23, 0
      %p111 = por %p109, %p110
      %s112 = ssub.s32 %s24, %s36
      %s113 = ssub.s32 %s25, %s32
      %s114 = sor.u32 %s112, %s113
      %p115 = scmp.eq.s32.totalorder %s114, 0
      %s117 = sadd.s32 %s116, 1
      %s118 = scalar_select %p115, %s116, %s117
      %p121 = pneg %p115
      %p122 = scmp.eq.s32.totalorder %s17, 1
      %p123 = por %p121, %p122
      %p124 = scmp.ne.s32.totalorder %s116, %s119
      %p125 = scmp.eq.s32.totalorder %s17, 0
      %p126 = por %p124, %p125
      %p127 = scmp.ne.s32.totalorder %s116, %s119
      %p128 = scmp.eq.s32.totalorder %s22, 1
      %p129 = por %p127, %p128
      %p130 = scmp.ne.s32.totalorder %s119, %s120
      %p131 = scmp.eq.s32.totalorder %s22, 0
      %p132 = por %p130, %p131
      %p133 = scmp.ne.s32.totalorder %s119, %s120
      %p134 = scmp.eq.s32.totalorder %s23, 1
      %p135 = por %p133, %p134
      %p137 = scmp.ne.s32.totalorder %s120, %s136
      %p138 = scmp.eq.s32.totalorder %s23, 0
      %p139 = por %p137, %p138
      %s140 = ssub.s32 %s24, %s36
      %s141 = ssub.s32 %s25, %s32
      %s142 = sor.u32 %s140, %s141
      %p143 = scmp.eq.s32.totalorder %s142, 0
      %s145 = sadd.s32 %s144, 1
      %s146 = scalar_select %p143, %s144, %s145
      %p149 = pneg %p143
      %p150 = scmp.eq.s32.totalorder %s17, 1
      %p151 = por %p149, %p150
      %p152 = scmp.ne.s32.totalorder %s144, %s147
      %p153 = scmp.eq.s32.totalorder %s17, 0
      %p154 = por %p152, %p153
      %p155 = scmp.ne.s32.totalorder %s144, %s147
      %p156 = scmp.eq.s32.totalorder %s22, 1
      %p157 = por %p155, %p156
      %p158 = scmp.ne.s32.totalorder %s147, %s148
      %p159 = scmp.eq.s32.totalorder %s22, 0
      %p160 = por %p158, %p159
      %p161 = scmp.ne.s32.totalorder %s147, %s148
      %p162 = scmp.eq.s32.totalorder %s23, 1
      %p163 = por %p161, %p162
      %p165 = scmp.ne.s32.totalorder %s148, %s164
      %p166 = scmp.eq.s32.totalorder %s23, 0
      %p167 = por %p165, %p166
      %p168 = scmp.le.s32.totalorder 1, %s17
      %p169 = scmp.lt.s32.totalorder %s17, 3
      %p170 = pnand %p168, %p169
      %p171 = pneg %p170
      // Predicated region
      $region9: #{tpu_custom_call.1} parent=5 // pred_check
        _
      $region10: #{tpu_custom_call.1} parent=5 // pred_check_branch
        %173 = sbr.rel (%p170) target = $region12
      $region11: #{tpu_custom_call.1} parent=5 // pred_region
        %s174 = ssub.s32 %s17, 1
        // Predicated region
        $region13: #{tpu_custom_call.1} parent=11 // pred_check
          %p175 = pneg %p76
        $region14: #{tpu_custom_call.1} parent=11 // pred_check_branch
          %177 = sbr.rel (%p175) target = $region16
        $region15: #{tpu_custom_call.1} parent=11 // pred_region
          _
        $region16: #{tpu_custom_call.1} parent=11 // pred_fallthru
          _
      $region12: #{tpu_custom_call.1} parent=5 // pred_fallthru
        _
      %p178 = scmp.lt.s32.totalorder %s17, 2
      // Predicated region
      $region17: #{tpu_custom_call.1} parent=5 // pred_check
        %p179 = pneg %p178
      $region18: #{tpu_custom_call.1} parent=5 // pred_check_branch
        %181 = sbr.rel (%p179) target = $region20
      $region19: #{tpu_custom_call.1} parent=5 // pred_region
        // Predicated region
        $region21: #{tpu_custom_call.1} parent=19 // pred_check
          %p182 = pneg %p49
        $region22: #{tpu_custom_call.1} parent=19 // pred_check_branch
          %184 = sbr.rel (%p182) target = $region24
        $region23: #{tpu_custom_call.1} parent=19 // pred_region
          %p185 = scmp.lt.s32.totalorder %s24, 1
          %s186 = scalar_select %p185, %s24, 1
          %s187 = smul.addr %s186, 36
          %s188 = smul.addr %s187, 4
          %s189 = scalar_lea.vmem %s0, %s188
        $region24: #{tpu_custom_call.1} parent=19 // pred_fallthru
          _
      $region20: #{tpu_custom_call.1} parent=5 // pred_fallthru
        _
      %p190 = scmp.le.s32.totalorder 1, %s17
      %p191 = scmp.lt.s32.totalorder %s17, 3
      %p192 = pnand %p190, %p191
      %p193 = pneg %p192
      // Predicated region
      $region25: #{tpu_custom_call.1} parent=5 // pred_check
        _
      $region26: #{tpu_custom_call.1} parent=5 // pred_check_branch
        %195 = sbr.rel (%p192) target = $region28
      $region27: #{tpu_custom_call.1} parent=5 // pred_region
        %s196 = ssub.s32 %s17, 1
        %p197 = scmp.lt.s32.totalorder %s26, 1
        %s198 = scalar_select %p197, %s26, 1
        %s199 = smul.addr %s198, 36
        %s200 = smul.addr %s199, 4
        %s201 = scalar_lea.vmem %s0, %s200
        %p202 = pneg %p55
        %p203 = pneg %p52
        %p204 = pneg %p76
        %p205 = pneg %p73
        %p206 = pneg %p104
        %p207 = pneg %p101
        %s208 = sand.u32 %s91, 1
        %s209 = scalar_lea.sflag [#allocation3], %s208
        %s210 = sand.u32 %s91, 1
        %s211 = smul.addr %s210, 128
        %s212 = scalar_lea.vmem [#allocation2], %s211
        %p213 = pneg %p132
        %p214 = pneg %p129
        %s215 = sand.u32 %s22, 1
        %s216 = scalar_lea.sflag [#allocation5], %s215
        %s217 = sand.u32 %s119, 1
        %s218 = smul.addr %s217, 8
        %s219 = scalar_lea.vmem [#allocation4], %s218
        %p220 = pneg %p160
        %p221 = pneg %p157
        %s222 = sand.u32 %s22, 1
        %s223 = scalar_lea.sflag [#allocation5], %s222
        %s224 = sand.u32 %s147, 1
        %s225 = smul.addr %s224, 8
        %s226 = scalar_lea.vmem [#allocation6], %s225
        %p227 = scmp.lt.s32.totalorder %s26, 1
        %s228 = scalar_select %p227, %s26, 1
        %s229 = smul.addr %s228, 36
        %s230 = smul.addr %s229, 4
        %s231 = scalar_lea.vmem %s0, %s230
        %s232 = smul.u32 32, %s27
        %s234 = smul.u32 %s27, 256
        %s235 = sshra.s32 %s234, 3
        %s236 = sand.u32 %s234, 7
        %s237 = smul.addr %s235, 4
        %s238 = scalar_lea.vmem %s231, %s237
        %v239 = vld [vmem:[%s238] sm:$0xf]
        %v240 = vld [vmem:[%s238 + $0x4] sm:$0xf]
        %v241 = vld [vmem:[%s238 + $0x8] sm:$0xf]
        %v242 = vld [vmem:[%s238 + $0xc] sm:$0xf]
        %v243 = vld [vmem:[%s238 + $0x10] sm:$0xf]
        %v244 = vld [vmem:[%s238 + $0x14] sm:$0xf]
        %v245 = vld [vmem:[%s238 + $0x18] sm:$0xf]
        %v246 = vld [vmem:[%s238 + $0x1c] sm:$0xf]
        %v247 = vld [vmem:[%s238 + $0x20] sm:$0xf]
        %v248 = vld [vmem:[%s238 + $0x24] sm:$0xf]
        %v249 = vld [vmem:[%s238 + $0x28] sm:$0xf]
        %v250 = vld [vmem:[%s238 + $0x2c] sm:$0xf]
        %v251 = vld [vmem:[%s238 + $0x30] sm:$0xf]
        %v252 = vld [vmem:[%s238 + $0x34] sm:$0xf]
        %v253 = vld [vmem:[%s238 + $0x38] sm:$0xf]
        %v254 = vld [vmem:[%s238 + $0x3c] sm:$0xf]
        %v255 = vld [vmem:[%s238 + $0x40] sm:$0xf]
        %v256 = vld [vmem:[%s238 + $0x44] sm:$0xf]
        %v257 = vld [vmem:[%s238 + $0x48] sm:$0xf]
        %v258 = vld [vmem:[%s238 + $0x4c] sm:$0xf]
        %v259 = vld [vmem:[%s238 + $0x50] sm:$0xf]
        %v260 = vld [vmem:[%s238 + $0x54] sm:$0xf]
        %v261 = vld [vmem:[%s238 + $0x58] sm:$0xf]
        %v262 = vld [vmem:[%s238 + $0x5c] sm:$0xf]
        %v263 = vld [vmem:[%s238 + $0x60] sm:$0xf]
        %v264 = vld [vmem:[%s238 + $0x64] sm:$0xf]
        %v265 = vld [vmem:[%s238 + $0x68] sm:$0xf]
        %v266 = vld [vmem:[%s238 + $0x6c] sm:$0xf]
        %v267 = vld [vmem:[%s238 + $0x70] sm:$0xf]
        %v268 = vld [vmem:[%s238 + $0x74] sm:$0xf]
        %v269 = vld [vmem:[%s238 + $0x78] sm:$0xf]
        %v270 = vld [vmem:[%s238 + $0x7c] sm:$0xf]
        %v271 = vld [vmem:[%s1] sm:$0xf]
        %v272 = vld [vmem:[%s1 + $0x4] sm:$0xf]
        %v273 = vld [vmem:[%s1 + $0x8] sm:$0xf]
        %s274 = sadd.s32 %s234, 16
        %s275 = sshra.s32 %s274, 3
        %s276 = sand.u32 %s274, 7
        %s277 = smul.addr %s275, 4
        %s278 = scalar_lea.vmem %s231, %s277
        %v279 = vld [vmem:[%s278] sm:$0xf]
        %v280 = vld [vmem:[%s278 + $0x4] sm:$0xf]
        %v281 = vld [vmem:[%s278 + $0x8] sm:$0xf]
        %v282 = vld [vmem:[%s278 + $0xc] sm:$0xf]
        %v283 = vld [vmem:[%s278 + $0x10] sm:$0xf]
        %v284 = vld [vmem:[%s278 + $0x14] sm:$0xf]
        %v285 = vld [vmem:[%s278 + $0x18] sm:$0xf]
        %v286 = vld [vmem:[%s278 + $0x1c] sm:$0xf]
        %v287 = vld [vmem:[%s278 + $0x20] sm:$0xf]
        %v288 = vld [vmem:[%s278 + $0x24] sm:$0xf]
        %v289 = vld [vmem:[%s278 + $0x28] sm:$0xf]
        %v290 = vld [vmem:[%s278 + $0x2c] sm:$0xf]
        %v291 = vld [vmem:[%s278 + $0x30] sm:$0xf]
        %v292 = vld [vmem:[%s278 + $0x34] sm:$0xf]
        %v293 = vld [vmem:[%s278 + $0x38] sm:$0xf]
        %v294 = vld [vmem:[%s278 + $0x3c] sm:$0xf]
        %v295 = vld [vmem:[%s278 + $0x40] sm:$0xf]
        %v296 = vld [vmem:[%s278 + $0x44] sm:$0xf]
        %v297 = vld [vmem:[%s278 + $0x48] sm:$0xf]
        %v298 = vld [vmem:[%s278 + $0x4c] sm:$0xf]
        %v299 = vld [vmem:[%s278 + $0x50] sm:$0xf]
        %v300 = vld [vmem:[%s278 + $0x54] sm:$0xf]
        %v301 = vld [vmem:[%s278 + $0x58] sm:$0xf]
        %v302 = vld [vmem:[%s278 + $0x5c] sm:$0xf]
        %v303 = vld [vmem:[%s278 + $0x60] sm:$0xf]
        %v304 = vld [vmem:[%s278 + $0x64] sm:$0xf]
        %v305 = vld [vmem:[%s278 + $0x68] sm:$0xf]
        %v306 = vld [vmem:[%s278 + $0x6c] sm:$0xf]
        %v307 = vld [vmem:[%s278 + $0x70] sm:$0xf]
        %v308 = vld [vmem:[%s278 + $0x74] sm:$0xf]
        %v309 = vld [vmem:[%s278 + $0x78] sm:$0xf]
        %v310 = vld [vmem:[%s278 + $0x7c] sm:$0xf]
        %s311 = scalar_lea.vmem %s1, 12
        %v312 = vld [vmem:[%s311] sm:$0xf]
        %v313 = vld [vmem:[%s311 + $0x4] sm:$0xf]
        %v314 = vld [vmem:[%s311 + $0x8] sm:$0xf]
        %v347 = vunpack.c.l.b16 %v279
        %v348 = vunpack.c.l.b16 %v280
        %v349 = vunpack.c.l.b16 %v281
        %v350 = vunpack.c.l.b16 %v282
        %v351 = vunpack.c.l.b16 %v283
        %v352 = vunpack.c.l.b16 %v284
        %v353 = vunpack.c.l.b16 %v285
        %v354 = vunpack.c.l.b16 %v286
        %v355 = vunpack.c.l.b16 %v287
        %v356 = vunpack.c.l.b16 %v288
        %v357 = vunpack.c.l.b16 %v289
        %v358 = vunpack.c.l.b16 %v290
        %v359 = vunpack.c.l.b16 %v291
        %v360 = vunpack.c.l.b16 %v292
        %v361 = vunpack.c.l.b16 %v293
        %v362 = vunpack.c.l.b16 %v294
        %v363 = vunpack.c.l.b16 %v295
        %v364 = vunpack.c.l.b16 %v296
        %v365 = vunpack.c.l.b16 %v297
        %v366 = vunpack.c.l.b16 %v298
        %v367 = vunpack.c.l.b16 %v299
        %v368 = vunpack.c.l.b16 %v300
        %v369 = vunpack.c.l.b16 %v301
        %v370 = vunpack.c.l.b16 %v302
        %v371 = vunpack.c.l.b16 %v303
        %v372 = vunpack.c.l.b16 %v304
        %v373 = vunpack.c.l.b16 %v305
        %v374 = vunpack.c.l.b16 %v306
        %v375 = vunpack.c.l.b16 %v307
        %v376 = vunpack.c.l.b16 %v308
        %v377 = vunpack.c.l.b16 %v309
        %v378 = vunpack.c.l.b16 %v310
        %v379 = vpack.c.b16 %v348, %v347
        %v380 = vpack.c.b16 %v350, %v349
        %v381 = vpack.c.b16 %v352, %v351
        %v382 = vpack.c.b16 %v354, %v353
        %v383 = vpack.c.b16 %v356, %v355
        %v384 = vpack.c.b16 %v358, %v357
        %v385 = vpack.c.b16 %v360, %v359
        %v386 = vpack.c.b16 %v362, %v361
        %v387 = vpack.c.b16 %v364, %v363
        %v388 = vpack.c.b16 %v366, %v365
        %v389 = vpack.c.b16 %v368, %v367
        %v390 = vpack.c.b16 %v370, %v369
        %v391 = vpack.c.b16 %v372, %v371
        %v392 = vpack.c.b16 %v374, %v373
        %v393 = vpack.c.b16 %v376, %v375
        %v394 = vpack.c.b16 %v378, %v377
        %v398 = vunpack.c.l.b16 %v312
        %v399 = vunpack.c.l.b16 %v313
        %v400 = vunpack.c.l.b16 %v314
        %v401 = vpack.c.b16 %v399, %v398
        %v402 = vpack.c.b16 %v400, %v400
        %vm404 = vcmask 195584
        %v406 = vsel %vm404, %v379, 0
        %v409 = vsel %vm404, %v380, 0
        %v412 = vsel %vm404, %v381, 0
        %v415 = vsel %vm404, %v382, 0
        %v418 = vsel %vm404, %v383, 0
        %v421 = vsel %vm404, %v384, 0
        %v424 = vsel %vm404, %v385, 0
        %v427 = vsel %vm404, %v386, 0
        %v430 = vsel %vm404, %v387, 0
        %v433 = vsel %vm404, %v388, 0
        %v436 = vsel %vm404, %v389, 0
        %v439 = vsel %vm404, %v390, 0
        %v442 = vsel %vm404, %v391, 0
        %v445 = vsel %vm404, %v392, 0
        %v448 = vsel %vm404, %v393, 0
        %v451 = vsel %vm404, %v394, 0
        %vm453 = vcmask 1043456
        %v455 = vsel %vm453, %v402, 0
        %457 = vmatpush.bf16.msra.mxu0 0
        %458 = vmatpush.bf16.msra.mxu0 0
        %459 = vmatpush.bf16.msra.mxu0 0
        %460 = vmatpush.bf16.msra.mxu0 0
        %461 = vmatpush.bf16.msra.mxu0 0
        %462 = vmatpush.bf16.msra.mxu0 0
        %463 = vmatpush.bf16.msra.mxu0 %v455
        %464 = vmatpush.bf16.msra.mxu0 %v401
        %465 = vmatmul.bf16.gmra.mxu0 %v406
        %v466 = vpop.f32.mrf.mxu0
        %v467 = vadd.f32 0.0, %v466
        %v468 = vpop.f32.mrf.mxu0
        %v469 = vadd.f32 0.0, %v468
        %470 = vmatmul.bf16.gmra.mxu0 %v409
        %v471 = vpop.f32.mrf.mxu0
        %v472 = vadd.f32 0.0, %v471
        %v473 = vpop.f32.mrf.mxu0
        %v474 = vadd.f32 0.0, %v473
        %475 = vmatmul.bf16.gmra.mxu0 %v412
        %v476 = vpop.f32.mrf.mxu0
        %v477 = vadd.f32 0.0, %v476
        %v478 = vpop.f32.mrf.mxu0
        %v479 = vadd.f32 0.0, %v478
        %480 = vmatmul.bf16.gmra.mxu0 %v415
        %v481 = vpop.f32.mrf.mxu0
        %v482 = vadd.f32 0.0, %v481
        %v483 = vpop.f32.mrf.mxu0
        %v484 = vadd.f32 0.0, %v483
        %485 = vmatmul.bf16.gmra.mxu0 %v418
        %v486 = vpop.f32.mrf.mxu0
        %v487 = vadd.f32 0.0, %v486
        %v488 = vpop.f32.mrf.mxu0
        %v489 = vadd.f32 0.0, %v488
        %490 = vmatmul.bf16.gmra.mxu0 %v421
        %v491 = vpop.f32.mrf.mxu0
        %v492 = vadd.f32 0.0, %v491
        %v493 = vpop.f32.mrf.mxu0
        %v494 = vadd.f32 0.0, %v493
        %495 = vmatmul.bf16.gmra.mxu0 %v424
        %v496 = vpop.f32.mrf.mxu0
        %v497 = vadd.f32 0.0, %v496
        %v498 = vpop.f32.mrf.mxu0
        %v499 = vadd.f32 0.0, %v498
        %500 = vmatmul.bf16.gmra.mxu0 %v427
        %v501 = vpop.f32.mrf.mxu0
        %v502 = vadd.f32 0.0, %v501
        %v503 = vpop.f32.mrf.mxu0
        %v504 = vadd.f32 0.0, %v503
        %505 = vmatmul.bf16.gmra.mxu0 %v430
        %v506 = vpop.f32.mrf.mxu0
        %v507 = vadd.f32 0.0, %v506
        %v508 = vpop.f32.mrf.mxu0
        %v509 = vadd.f32 0.0, %v508
        %510 = vmatmul.bf16.gmra.mxu0 %v433
        %v511 = vpop.f32.mrf.mxu0
        %v512 = vadd.f32 0.0, %v511
        %v513 = vpop.f32.mrf.mxu0
        %v514 = vadd.f32 0.0, %v513
        %515 = vmatmul.bf16.gmra.mxu0 %v436
        %v516 = vpop.f32.mrf.mxu0
        %v517 = vadd.f32 0.0, %v516
        %v518 = vpop.f32.mrf.mxu0
        %v519 = vadd.f32 0.0, %v518
        %520 = vmatmul.bf16.gmra.mxu0 %v439
        %v521 = vpop.f32.mrf.mxu0
        %v522 = vadd.f32 0.0, %v521
        %v523 = vpop.f32.mrf.mxu0
        %v524 = vadd.f32 0.0, %v523
        %525 = vmatmul.bf16.gmra.mxu0 %v442
        %v526 = vpop.f32.mrf.mxu0
        %v527 = vadd.f32 0.0, %v526
        %v528 = vpop.f32.mrf.mxu0
        %v529 = vadd.f32 0.0, %v528
        %530 = vmatmul.bf16.gmra.mxu0 %v445
        %v531 = vpop.f32.mrf.mxu0
        %v532 = vadd.f32 0.0, %v531
        %v533 = vpop.f32.mrf.mxu0
        %v534 = vadd.f32 0.0, %v533
        %535 = vmatmul.bf16.gmra.mxu0 %v448
        %v536 = vpop.f32.mrf.mxu0
        %v537 = vadd.f32 0.0, %v536
        %v538 = vpop.f32.mrf.mxu0
        %v539 = vadd.f32 0.0, %v538
        %540 = vmatmul.bf16.gmra.mxu0 %v451
        %v541 = vpop.f32.mrf.mxu0
        %v542 = vadd.f32 0.0, %v541
        %v543 = vpop.f32.mrf.mxu0
        %v544 = vadd.f32 0.0, %v543
        %545 = vdwg.mxu0
        %v578 = vunpack.c.l.b16 %v239
        %v579 = vunpack.c.l.b16 %v240
        %v580 = vunpack.c.l.b16 %v241
        %v581 = vunpack.c.l.b16 %v242
        %v582 = vunpack.c.l.b16 %v243
        %v583 = vunpack.c.l.b16 %v244
        %v584 = vunpack.c.l.b16 %v245
        %v585 = vunpack.c.l.b16 %v246
        %v586 = vunpack.c.l.b16 %v247
        %v587 = vunpack.c.l.b16 %v248
        %v588 = vunpack.c.l.b16 %v249
        %v589 = vunpack.c.l.b16 %v250
        %v590 = vunpack.c.l.b16 %v251
        %v591 = vunpack.c.l.b16 %v252
        %v592 = vunpack.c.l.b16 %v253
        %v593 = vunpack.c.l.b16 %v254
        %v594 = vunpack.c.l.b16 %v255
        %v595 = vunpack.c.l.b16 %v256
        %v596 = vunpack.c.l.b16 %v257
        %v597 = vunpack.c.l.b16 %v258
        %v598 = vunpack.c.l.b16 %v259
        %v599 = vunpack.c.l.b16 %v260
        %v600 = vunpack.c.l.b16 %v261
        %v601 = vunpack.c.l.b16 %v262
        %v602 = vunpack.c.l.b16 %v263
        %v603 = vunpack.c.l.b16 %v264
        %v604 = vunpack.c.l.b16 %v265
        %v605 = vunpack.c.l.b16 %v266
        %v606 = vunpack.c.l.b16 %v267
        %v607 = vunpack.c.l.b16 %v268
        %v608 = vunpack.c.l.b16 %v269
        %v609 = vunpack.c.l.b16 %v270
        %v610 = vpack.c.b16 %v579, %v578
        %v611 = vpack.c.b16 %v581, %v580
        %v612 = vpack.c.b16 %v583, %v582
        %v613 = vpack.c.b16 %v585, %v584
        %v614 = vpack.c.b16 %v587, %v586
        %v615 = vpack.c.b16 %v589, %v588
        %v616 = vpack.c.b16 %v591, %v590
        %v617 = vpack.c.b16 %v593, %v592
        %v618 = vpack.c.b16 %v595, %v594
        %v619 = vpack.c.b16 %v597, %v596
        %v620 = vpack.c.b16 %v599, %v598
        %v621 = vpack.c.b16 %v601, %v600
        %v622 = vpack.c.b16 %v603, %v602
        %v623 = vpack.c.b16 %v605, %v604
        %v624 = vpack.c.b16 %v607, %v606
        %v625 = vpack.c.b16 %v609, %v608
        %v629 = vunpack.c.l.b16 %v271
        %v630 = vunpack.c.l.b16 %v272
        %v631 = vunpack.c.l.b16 %v273
        %v632 = vpack.c.b16 %v630, %v629
        %v633 = vpack.c.b16 %v631, %v631
        %v636 = vsel %vm404, %v610, 0
        %v639 = vsel %vm404, %v611, 0
        %v642 = vsel %vm404, %v612, 0
        %v645 = vsel %vm404, %v613, 0
        %v648 = vsel %vm404, %v614, 0
        %v651 = vsel %vm404, %v615, 0
        %v654 = vsel %vm404, %v616, 0
        %v657 = vsel %vm404, %v617, 0
        %v660 = vsel %vm404, %v618, 0
        %v663 = vsel %vm404, %v619, 0
        %v666 = vsel %vm404, %v620, 0
        %v669 = vsel %vm404, %v621, 0
        %v672 = vsel %vm404, %v622, 0
        %v675 = vsel %vm404, %v623, 0
        %v678 = vsel %vm404, %v624, 0
        %v681 = vsel %vm404, %v625, 0
        %v684 = vsel %vm453, %v633, 0
        %686 = vmatpush.bf16.msra.mxu0 0
        %687 = vmatpush.bf16.msra.mxu0 0
        %688 = vmatpush.bf16.msra.mxu0 0
        %689 = vmatpush.bf16.msra.mxu0 0
        %690 = vmatpush.bf16.msra.mxu0 0
        %691 = vmatpush.bf16.msra.mxu0 0
        %692 = vmatpush.bf16.msra.mxu0 %v684
        %693 = vmatpush.bf16.msra.mxu0 %v632
        %694 = vmatmul.bf16.gmra.mxu0 %v636
        %v695 = vpop.f32.mrf.mxu0
        %v696 = vadd.f32 %v467, %v695
        %v697 = vpop.f32.mrf.mxu0
        %v698 = vadd.f32 %v469, %v697
        %699 = vmatmul.bf16.gmra.mxu0 %v639
        %v700 = vpop.f32.mrf.mxu0
        %v701 = vadd.f32 %v472, %v700
        %v702 = vpop.f32.mrf.mxu0
        %v703 = vadd.f32 %v474, %v702
        %704 = vmatmul.bf16.gmra.mxu0 %v642
        %v705 = vpop.f32.mrf.mxu0
        %v706 = vadd.f32 %v477, %v705
        %v707 = vpop.f32.mrf.mxu0
        %v708 = vadd.f32 %v479, %v707
        %709 = vmatmul.bf16.gmra.mxu0 %v645
        %v710 = vpop.f32.mrf.mxu0
        %v711 = vadd.f32 %v482, %v710
        %v712 = vpop.f32.mrf.mxu0
        %v713 = vadd.f32 %v484, %v712
        %714 = vmatmul.bf16.gmra.mxu0 %v648
        %v715 = vpop.f32.mrf.mxu0
        %v716 = vadd.f32 %v487, %v715
        %v717 = vpop.f32.mrf.mxu0
        %v718 = vadd.f32 %v489, %v717
        %719 = vmatmul.bf16.gmra.mxu0 %v651
        %v720 = vpop.f32.mrf.mxu0
        %v721 = vadd.f32 %v492, %v720
        %v722 = vpop.f32.mrf.mxu0
        %v723 = vadd.f32 %v494, %v722
        %724 = vmatmul.bf16.gmra.mxu0 %v654
        %v725 = vpop.f32.mrf.mxu0
        %v726 = vadd.f32 %v497, %v725
        %v727 = vpop.f32.mrf.mxu0
        %v728 = vadd.f32 %v499, %v727
        %729 = vmatmul.bf16.gmra.mxu0 %v657
        %v730 = vpop.f32.mrf.mxu0
        %v731 = vadd.f32 %v502, %v730
        %v732 = vpop.f32.mrf.mxu0
        %v733 = vadd.f32 %v504, %v732
        %734 = vmatmul.bf16.gmra.mxu0 %v660
        %v735 = vpop.f32.mrf.mxu0
        %v736 = vadd.f32 %v507, %v735
        %v737 = vpop.f32.mrf.mxu0
        %v738 = vadd.f32 %v509, %v737
        %739 = vmatmul.bf16.gmra.mxu0 %v663
        %v740 = vpop.f32.mrf.mxu0
        %v741 = vadd.f32 %v512, %v740
        %v742 = vpop.f32.mrf.mxu0
        %v743 = vadd.f32 %v514, %v742
        %744 = vmatmul.bf16.gmra.mxu0 %v666
        %v745 = vpop.f32.mrf.mxu0
        %v746 = vadd.f32 %v517, %v745
        %v747 = vpop.f32.mrf.mxu0
        %v748 = vadd.f32 %v519, %v747
        %749 = vmatmul.bf16.gmra.mxu0 %v669
        %v750 = vpop.f32.mrf.mxu0
        %v751 = vadd.f32 %v522, %v750
        %v752 = vpop.f32.mrf.mxu0
        %v753 = vadd.f32 %v524, %v752
        %754 = vmatmul.bf16.gmra.mxu0 %v672
        %v755 = vpop.f32.mrf.mxu0
        %v756 = vadd.f32 %v527, %v755
        %v757 = vpop.f32.mrf.mxu0
        %v758 = vadd.f32 %v529, %v757
        %759 = vmatmul.bf16.gmra.mxu0 %v675
        %v760 = vpop.f32.mrf.mxu0
        %v761 = vadd.f32 %v532, %v760
        %v762 = vpop.f32.mrf.mxu0
        %v763 = vadd.f32 %v534, %v762
        %764 = vmatmul.bf16.gmra.mxu0 %v678
        %v765 = vpop.f32.mrf.mxu0
        %v766 = vadd.f32 %v537, %v765
        %v767 = vpop.f32.mrf.mxu0
        %v768 = vadd.f32 %v539, %v767
        %769 = vmatmul.bf16.gmra.mxu0 %v681
        %v770 = vpop.f32.mrf.mxu0
        %v771 = vadd.f32 %v542, %v770
        %v772 = vpop.f32.mrf.mxu0
        %v773 = vadd.f32 %v544, %v772
        %774 = vdwg.mxu0
        %s775 = sadd.s32 %s234, 32
        %s776 = sshra.s32 %s775, 3
        %s777 = sand.u32 %s775, 7
        %s778 = smul.addr %s776, 4
        %s779 = scalar_lea.vmem %s231, %s778
        %v780 = vld [vmem:[%s779] sm:$0xf]
        %v781 = vld [vmem:[%s779 + $0x4] sm:$0xf]
        %v782 = vld [vmem:[%s779 + $0x8] sm:$0xf]
        %v783 = vld [vmem:[%s779 + $0xc] sm:$0xf]
        %v784 = vld [vmem:[%s779 + $0x10] sm:$0xf]
        %v785 = vld [vmem:[%s779 + $0x14] sm:$0xf]
        %v786 = vld [vmem:[%s779 + $0x18] sm:$0xf]
        %v787 = vld [vmem:[%s779 + $0x1c] sm:$0xf]
        %v788 = vld [vmem:[%s779 + $0x20] sm:$0xf]
        %v789 = vld [vmem:[%s779 + $0x24] sm:$0xf]
        %v790 = vld [vmem:[%s779 + $0x28] sm:$0xf]
        %v791 = vld [vmem:[%s779 + $0x2c] sm:$0xf]
        %v792 = vld [vmem:[%s779 + $0x30] sm:$0xf]
        %v793 = vld [vmem:[%s779 + $0x34] sm:$0xf]
        %v794 = vld [vmem:[%s779 + $0x38] sm:$0xf]
        %v795 = vld [vmem:[%s779 + $0x3c] sm:$0xf]
        %v796 = vld [vmem:[%s779 + $0x40] sm:$0xf]
        %v797 = vld [vmem:[%s779 + $0x44] sm:$0xf]
        %v798 = vld [vmem:[%s779 + $0x48] sm:$0xf]
        %v799 = vld [vmem:[%s779 + $0x4c] sm:$0xf]
        %v800 = vld [vmem:[%s779 + $0x50] sm:$0xf]
        %v801 = vld [vmem:[%s779 + $0x54] sm:$0xf]
        %v802 = vld [vmem:[%s779 + $0x58] sm:$0xf]
        %v803 = vld [vmem:[%s779 + $0x5c] sm:$0xf]
        %v804 = vld [vmem:[%s779 + $0x60] sm:$0xf]
        %v805 = vld [vmem:[%s779 + $0x64] sm:$0xf]
        %v806 = vld [vmem:[%s779 + $0x68] sm:$0xf]
        %v807 = vld [vmem:[%s779 + $0x6c] sm:$0xf]
        %v808 = vld [vmem:[%s779 + $0x70] sm:$0xf]
        %v809 = vld [vmem:[%s779 + $0x74] sm:$0xf]
        %v810 = vld [vmem:[%s779 + $0x78] sm:$0xf]
        %v811 = vld [vmem:[%s779 + $0x7c] sm:$0xf]
        %s812 = scalar_lea.vmem %s1, 24
        %v813 = vld [vmem:[%s812] sm:$0xf]
        %v814 = vld [vmem:[%s812 + $0x4] sm:$0xf]
        %v815 = vld [vmem:[%s812 + $0x8] sm:$0xf]
        %v848 = vunpack.c.l.b16 %v780
        %v849 = vunpack.c.l.b16 %v781
        %v850 = vunpack.c.l.b16 %v782
        %v851 = vunpack.c.l.b16 %v783
        %v852 = vunpack.c.l.b16 %v784
        %v853 = vunpack.c.l.b16 %v785
        %v854 = vunpack.c.l.b16 %v786
        %v855 = vunpack.c.l.b16 %v787
        %v856 = vunpack.c.l.b16 %v788
        %v857 = vunpack.c.l.b16 %v789
        %v858 = vunpack.c.l.b16 %v790
        %v859 = vunpack.c.l.b16 %v791
        %v860 = vunpack.c.l.b16 %v792
        %v861 = vunpack.c.l.b16 %v793
        %v862 = vunpack.c.l.b16 %v794
        %v863 = vunpack.c.l.b16 %v795
        %v864 = vunpack.c.l.b16 %v796
        %v865 = vunpack.c.l.b16 %v797
        %v866 = vunpack.c.l.b16 %v798
        %v867 = vunpack.c.l.b16 %v799
        %v868 = vunpack.c.l.b16 %v800
        %v869 = vunpack.c.l.b16 %v801
        %v870 = vunpack.c.l.b16 %v802
        %v871 = vunpack.c.l.b16 %v803
        %v872 = vunpack.c.l.b16 %v804
        %v873 = vunpack.c.l.b16 %v805
        %v874 = vunpack.c.l.b16 %v806
        %v875 = vunpack.c.l.b16 %v807
        %v876 = vunpack.c.l.b16 %v808
        %v877 = vunpack.c.l.b16 %v809
        %v878 = vunpack.c.l.b16 %v810
        %v879 = vunpack.c.l.b16 %v811
        %v880 = vpack.c.b16 %v849, %v848
        %v881 = vpack.c.b16 %v851, %v850
        %v882 = vpack.c.b16 %v853, %v852
        %v883 = vpack.c.b16 %v855, %v854
        %v884 = vpack.c.b16 %v857, %v856
        %v885 = vpack.c.b16 %v859, %v858
        %v886 = vpack.c.b16 %v861, %v860
        %v887 = vpack.c.b16 %v863, %v862
        %v888 = vpack.c.b16 %v865, %v864
        %v889 = vpack.c.b16 %v867, %v866
        %v890 = vpack.c.b16 %v869, %v868
        %v891 = vpack.c.b16 %v871, %v870
        %v892 = vpack.c.b16 %v873, %v872
        %v893 = vpack.c.b16 %v875, %v874
        %v894 = vpack.c.b16 %v877, %v876
        %v895 = vpack.c.b16 %v879, %v878
        %v899 = vunpack.c.l.b16 %v813
        %v900 = vunpack.c.l.b16 %v814
        %v901 = vunpack.c.l.b16 %v815
        %v902 = vpack.c.b16 %v900, %v899
        %v903 = vpack.c.b16 %v901, %v901
        %v906 = vsel %vm404, %v880, 0
        %v909 = vsel %vm404, %v881, 0
        %v912 = vsel %vm404, %v882, 0
        %v915 = vsel %vm404, %v883, 0
        %v918 = vsel %vm404, %v884, 0
        %v921 = vsel %vm404, %v885, 0
        %v924 = vsel %vm404, %v886, 0
        %v927 = vsel %vm404, %v887, 0
        %v930 = vsel %vm404, %v888, 0
        %v933 = vsel %vm404, %v889, 0
        %v936 = vsel %vm404, %v890, 0
        %v939 = vsel %vm404, %v891, 0
        %v942 = vsel %vm404, %v892, 0
        %v945 = vsel %vm404, %v893, 0
        %v948 = vsel %vm404, %v894, 0
        %v951 = vsel %vm404, %v895, 0
        %v954 = vsel %vm453, %v903, 0
        %956 = vmatpush.bf16.msra.mxu0 0
        %957 = vmatpush.bf16.msra.mxu0 0
        %958 = vmatpush.bf16.msra.mxu0 0
        %959 = vmatpush.bf16.msra.mxu0 0
        %960 = vmatpush.bf16.msra.mxu0 0
        %961 = vmatpush.bf16.msra.mxu0 0
        %962 = vmatpush.bf16.msra.mxu0 %v954
        %963 = vmatpush.bf16.msra.mxu0 %v902
        %964 = vmatmul.bf16.gmra.mxu0 %v906
        %v965 = vpop.f32.mrf.mxu0
        %v966 = vadd.f32 0.0, %v965
        %v967 = vpop.f32.mrf.mxu0
        %v968 = vadd.f32 0.0, %v967
        %969 = vmatmul.bf16.gmra.mxu0 %v909
        %v970 = vpop.f32.mrf.mxu0
        %v971 = vadd.f32 0.0, %v970
        %v972 = vpop.f32.mrf.mxu0
        %v973 = vadd.f32 0.0, %v972
        %974 = vmatmul.bf16.gmra.mxu0 %v912
        %v975 = vpop.f32.mrf.mxu0
        %v976 = vadd.f32 0.0, %v975
        %v977 = vpop.f32.mrf.mxu0
        %v978 = vadd.f32 0.0, %v977
        %979 = vmatmul.bf16.gmra.mxu0 %v915
        %v980 = vpop.f32.mrf.mxu0
        %v981 = vadd.f32 0.0, %v980
        %v982 = vpop.f32.mrf.mxu0
        %v983 = vadd.f32 0.0, %v982
        %984 = vmatmul.bf16.gmra.mxu0 %v918
        %v985 = vpop.f32.mrf.mxu0
        %v986 = vadd.f32 0.0, %v985
        %v987 = vpop.f32.mrf.mxu0
        %v988 = vadd.f32 0.0, %v987
        %989 = vmatmul.bf16.gmra.mxu0 %v921
        %v990 = vpop.f32.mrf.mxu0
        %v991 = vadd.f32 0.0, %v990
        %v992 = vpop.f32.mrf.mxu0
        %v993 = vadd.f32 0.0, %v992
        %994 = vmatmul.bf16.gmra.mxu0 %v924
        %v995 = vpop.f32.mrf.mxu0
        %v996 = vadd.f32 0.0, %v995
        %v997 = vpop.f32.mrf.mxu0
        %v998 = vadd.f32 0.0, %v997
        %999 = vmatmul.bf16.gmra.mxu0 %v927
        %v1000 = vpop.f32.mrf.mxu0
        %v1001 = vadd.f32 0.0, %v1000
        %v1002 = vpop.f32.mrf.mxu0
        %v1003 = vadd.f32 0.0, %v1002
        %1004 = vmatmul.bf16.gmra.mxu0 %v930
        %v1005 = vpop.f32.mrf.mxu0
        %v1006 = vadd.f32 0.0, %v1005
        %v1007 = vpop.f32.mrf.mxu0
        %v1008 = vadd.f32 0.0, %v1007
        %1009 = vmatmul.bf16.gmra.mxu0 %v933
        %v1010 = vpop.f32.mrf.mxu0
        %v1011 = vadd.f32 0.0, %v1010
        %v1012 = vpop.f32.mrf.mxu0
        %v1013 = vadd.f32 0.0, %v1012
        %1014 = vmatmul.bf16.gmra.mxu0 %v936
        %v1015 = vpop.f32.mrf.mxu0
        %v1016 = vadd.f32 0.0, %v1015
        %v1017 = vpop.f32.mrf.mxu0
        %v1018 = vadd.f32 0.0, %v1017
        %1019 = vmatmul.bf16.gmra.mxu0 %v939
        %v1020 = vpop.f32.mrf.mxu0
        %v1021 = vadd.f32 0.0, %v1020
        %v1022 = vpop.f32.mrf.mxu0
        %v1023 = vadd.f32 0.0, %v1022
        %1024 = vmatmul.bf16.gmra.mxu0 %v942
        %v1025 = vpop.f32.mrf.mxu0
        %v1026 = vadd.f32 0.0, %v1025
        %v1027 = vpop.f32.mrf.mxu0
        %v1028 = vadd.f32 0.0, %v1027
        %1029 = vmatmul.bf16.gmra.mxu0 %v945
        %v1030 = vpop.f32.mrf.mxu0
        %v1031 = vadd.f32 0.0, %v1030
        %v1032 = vpop.f32.mrf.mxu0
        %v1033 = vadd.f32 0.0, %v1032
        %1034 = vmatmul.bf16.gmra.mxu0 %v948
        %v1035 = vpop.f32.mrf.mxu0
        %v1036 = vadd.f32 0.0, %v1035
        %v1037 = vpop.f32.mrf.mxu0
        %v1038 = vadd.f32 0.0, %v1037
        %1039 = vmatmul.bf16.gmra.mxu0 %v951
        %v1040 = vpop.f32.mrf.mxu0
        %v1041 = vadd.f32 0.0, %v1040
        %v1042 = vpop.f32.mrf.mxu0
        %v1043 = vadd.f32 0.0, %v1042
        %1044 = vdwg.mxu0
        %v1045 = vadd.f32 %v696, %v966
        %v1046 = vadd.f32 %v698, %v968
        %v1047 = vadd.f32 %v701, %v971
        %v1048 = vadd.f32 %v703, %v973
        %v1049 = vadd.f32 %v706, %v976
        %v1050 = vadd.f32 %v708, %v978
        %v1051 = vadd.f32 %v711, %v981
        %v1052 = vadd.f32 %v713, %v983
        %v1053 = vadd.f32 %v716, %v986
        %v1054 = vadd.f32 %v718, %v988
        %v1055 = vadd.f32 %v721, %v991
        %v1056 = vadd.f32 %v723, %v993
        %v1057 = vadd.f32 %v726, %v996
        %v1058 = vadd.f32 %v728, %v998
        %v1059 = vadd.f32 %v731, %v1001
        %v1060 = vadd.f32 %v733, %v1003
        %v1061 = vadd.f32 %v736, %v1006
        %v1062 = vadd.f32 %v738, %v1008
        %v1063 = vadd.f32 %v741, %v1011
        %v1064 = vadd.f32 %v743, %v1013
        %v1065 = vadd.f32 %v746, %v1016
        %v1066 = vadd.f32 %v748, %v1018
        %v1067 = vadd.f32 %v751, %v1021
        %v1068 = vadd.f32 %v753, %v1023
        %v1069 = vadd.f32 %v756, %v1026
        %v1070 = vadd.f32 %v758, %v1028
        %v1071 = vadd.f32 %v761, %v1031
        %v1072 = vadd.f32 %v763, %v1033
        %v1073 = vadd.f32 %v766, %v1036
        %v1074 = vadd.f32 %v768, %v1038
        %v1075 = vadd.f32 %v771, %v1041
        %v1076 = vadd.f32 %v773, %v1043
        %v1077 = vpack.c.bf16 %v1045, %v1045
        %v1078 = vpack.c.bf16 %v1046, %v1046
        %v1079 = vpack.c.bf16 %v1047, %v1047
        %v1080 = vpack.c.bf16 %v1048, %v1048
        %v1081 = vpack.c.bf16 %v1049, %v1049
        %v1082 = vpack.c.bf16 %v1050, %v1050
        %v1083 = vpack.c.bf16 %v1051, %v1051
        %v1084 = vpack.c.bf16 %v1052, %v1052
        %v1085 = vpack.c.bf16 %v1053, %v1053
        %v1086 = vpack.c.bf16 %v1054, %v1054
        %v1087 = vpack.c.bf16 %v1055, %v1055
        %v1088 = vpack.c.bf16 %v1056, %v1056
        %v1089 = vpack.c.bf16 %v1057, %v1057
        %v1090 = vpack.c.bf16 %v1058, %v1058
        %v1091 = vpack.c.bf16 %v1059, %v1059
        %v1092 = vpack.c.bf16 %v1060, %v1060
        %v1093 = vpack.c.bf16 %v1061, %v1061
        %v1094 = vpack.c.bf16 %v1062, %v1062
        %v1095 = vpack.c.bf16 %v1063, %v1063
        %v1096 = vpack.c.bf16 %v1064, %v1064
        %v1097 = vpack.c.bf16 %v1065, %v1065
        %v1098 = vpack.c.bf16 %v1066, %v1066
        %v1099 = vpack.c.bf16 %v1067, %v1067
        %v1100 = vpack.c.bf16 %v1068, %v1068
        %v1101 = vpack.c.bf16 %v1069, %v1069
        %v1102 = vpack.c.bf16 %v1070, %v1070
        %v1103 = vpack.c.bf16 %v1071, %v1071
        %v1104 = vpack.c.bf16 %v1072, %v1072
        %v1105 = vpack.c.bf16 %v1073, %v1073
        %v1106 = vpack.c.bf16 %v1074, %v1074
        %v1107 = vpack.c.bf16 %v1075, %v1075
        %v1108 = vpack.c.bf16 %v1076, %v1076
        %1109 = vst [vmem:[%s212] sm:$0xf] %v1077
        %1110 = vst [vmem:[%s212 + $0x4] sm:$0xf] %v1078
        %1111 = vst [vmem:[%s212 + $0x8] sm:$0xf] %v1079
        %1112 = vst [vmem:[%s212 + $0xc] sm:$0xf] %v1080
        %1113 = vst [vmem:[%s212 + $0x10] sm:$0xf] %v1081
        %1114 = vst [vmem:[%s212 + $0x14] sm:$0xf] %v1082
        %1115 = vst [vmem:[%s212 + $0x18] sm:$0xf] %v1083
        %1116 = vst [vmem:[%s212 + $0x1c] sm:$0xf] %v1084
        %1117 = vst [vmem:[%s212 + $0x20] sm:$0xf] %v1085
        %1118 = vst [vmem:[%s212 + $0x24] sm:$0xf] %v1086
        %1119 = vst [vmem:[%s212 + $0x28] sm:$0xf] %v1087
        %1120 = vst [vmem:[%s212 + $0x2c] sm:$0xf] %v1088
        %1121 = vst [vmem:[%s212 + $0x30] sm:$0xf] %v1089
        %1122 = vst [vmem:[%s212 + $0x34] sm:$0xf] %v1090
        %1123 = vst [vmem:[%s212 + $0x38] sm:$0xf] %v1091
        %1124 = vst [vmem:[%s212 + $0x3c] sm:$0xf] %v1092
        %1125 = vst [vmem:[%s212 + $0x40] sm:$0xf] %v1093
        %1126 = vst [vmem:[%s212 + $0x44] sm:$0xf] %v1094
        %1127 = vst [vmem:[%s212 + $0x48] sm:$0xf] %v1095
        %1128 = vst [vmem:[%s212 + $0x4c] sm:$0xf] %v1096
        %1129 = vst [vmem:[%s212 + $0x50] sm:$0xf] %v1097
        %1130 = vst [vmem:[%s212 + $0x54] sm:$0xf] %v1098
        %1131 = vst [vmem:[%s212 + $0x58] sm:$0xf] %v1099
        %1132 = vst [vmem:[%s212 + $0x5c] sm:$0xf] %v1100
        %1133 = vst [vmem:[%s212 + $0x60] sm:$0xf] %v1101
        %1134 = vst [vmem:[%s212 + $0x64] sm:$0xf] %v1102
        %1135 = vst [vmem:[%s212 + $0x68] sm:$0xf] %v1103
        %1136 = vst [vmem:[%s212 + $0x6c] sm:$0xf] %v1104
        %1137 = vst [vmem:[%s212 + $0x70] sm:$0xf] %v1105
        %1138 = vst [vmem:[%s212 + $0x74] sm:$0xf] %v1106
        %1139 = vst [vmem:[%s212 + $0x78] sm:$0xf] %v1107
        %1140 = vst [vmem:[%s212 + $0x7c] sm:$0xf] %v1108
        %v1141 = vadd.f32 %v1045, %v1046
        %v1142 = vadd.f32 %v1141, %v1047
        %v1143 = vadd.f32 %v1142, %v1048
        %v1144 = vadd.f32 %v1143, %v1049
        %v1145 = vadd.f32 %v1144, %v1050
        %v1146 = vadd.f32 %v1145, %v1051
        %v1147 = vadd.f32 %v1146, %v1052
        %v1148 = vadd.f32 %v1147, %v1053
        %v1149 = vadd.f32 %v1148, %v1054
        %v1150 = vadd.f32 %v1149, %v1055
        %v1151 = vadd.f32 %v1150, %v1056
        %v1152 = vadd.f32 %v1151, %v1057
        %v1153 = vadd.f32 %v1152, %v1058
        %v1154 = vadd.f32 %v1153, %v1059
        %v1155 = vadd.f32 %v1154, %v1060
        %v1156 = vadd.f32 %v1155, %v1061
        %v1157 = vadd.f32 %v1156, %v1062
        %v1158 = vadd.f32 %v1157, %v1063
        %v1159 = vadd.f32 %v1158, %v1064
        %v1160 = vadd.f32 %v1159, %v1065
        %v1161 = vadd.f32 %v1160, %v1066
        %v1162 = vadd.f32 %v1161, %v1067
        %v1163 = vadd.f32 %v1162, %v1068
        %v1164 = vadd.f32 %v1163, %v1069
        %v1165 = vadd.f32 %v1164, %v1070
        %v1166 = vadd.f32 %v1165, %v1071
        %v1167 = vadd.f32 %v1166, %v1072
        %v1168 = vadd.f32 %v1167, %v1073
        %v1169 = vadd.f32 %v1168, %v1074
        %v1170 = vadd.f32 %v1169, %v1075
        %v1171 = vadd.f32 %v1170, %v1076
        %v1172 = vrot.slane %v1171, 4
        %v1173 = vadd.f32 %v1171, %v1172
        %v1174 = vrot.slane %v1173, 2
        %v1175 = vadd.f32 %v1173, %v1174
        %v1176 = vrot.slane %v1175, 1
        %v1177 = vadd.f32 %v1175, %v1176
        %v1178 = vmul.f32 %v1045, %v1045
        %v1179 = vmul.f32 %v1046, %v1046
        %v1180 = vmul.f32 %v1047, %v1047
        %v1181 = vmul.f32 %v1048, %v1048
        %v1182 = vmul.f32 %v1049, %v1049
        %v1183 = vmul.f32 %v1050, %v1050
        %v1184 = vmul.f32 %v1051, %v1051
        %v1185 = vmul.f32 %v1052, %v1052
        %v1186 = vmul.f32 %v1053, %v1053
        %v1187 = vmul.f32 %v1054, %v1054
        %v1188 = vmul.f32 %v1055, %v1055
        %v1189 = vmul.f32 %v1056, %v1056
        %v1190 = vmul.f32 %v1057, %v1057
        %v1191 = vmul.f32 %v1058, %v1058
        %v1192 = vmul.f32 %v1059, %v1059
        %v1193 = vmul.f32 %v1060, %v1060
        %v1194 = vmul.f32 %v1061, %v1061
        %v1195 = vmul.f32 %v1062, %v1062
        %v1196 = vmul.f32 %v1063, %v1063
        %v1197 = vmul.f32 %v1064, %v1064
        %v1198 = vmul.f32 %v1065, %v1065
        %v1199 = vmul.f32 %v1066, %v1066
        %v1200 = vmul.f32 %v1067, %v1067
        %v1201 = vmul.f32 %v1068, %v1068
        %v1202 = vmul.f32 %v1069, %v1069
        %v1203 = vmul.f32 %v1070, %v1070
        %v1204 = vmul.f32 %v1071, %v1071
        %v1205 = vmul.f32 %v1072, %v1072
        %v1206 = vmul.f32 %v1073, %v1073
        %v1207 = vmul.f32 %v1074, %v1074
        %v1208 = vmul.f32 %v1075, %v1075
        %v1209 = vmul.f32 %v1076, %v1076
        %v1210 = vadd.f32 %v1178, %v1179
        %v1211 = vadd.f32 %v1210, %v1180
        %v1212 = vadd.f32 %v1211, %v1181
        %v1213 = vadd.f32 %v1212, %v1182
        %v1214 = vadd.f32 %v1213, %v1183
        %v1215 = vadd.f32 %v1214, %v1184
        %v1216 = vadd.f32 %v1215, %v1185
        %v1217 = vadd.f32 %v1216, %v1186
        %v1218 = vadd.f32 %v1217, %v1187
        %v1219 = vadd.f32 %v1218, %v1188
        %v1220 = vadd.f32 %v1219, %v1189
        %v1221 = vadd.f32 %v1220, %v1190
        %v1222 = vadd.f32 %v1221, %v1191
        %v1223 = vadd.f32 %v1222, %v1192
        %v1224 = vadd.f32 %v1223, %v1193
        %v1225 = vadd.f32 %v1224, %v1194
        %v1226 = vadd.f32 %v1225, %v1195
        %v1227 = vadd.f32 %v1226, %v1196
        %v1228 = vadd.f32 %v1227, %v1197
        %v1229 = vadd.f32 %v1228, %v1198
        %v1230 = vadd.f32 %v1229, %v1199
        %v1231 = vadd.f32 %v1230, %v1200
        %v1232 = vadd.f32 %v1231, %v1201
        %v1233 = vadd.f32 %v1232, %v1202
        %v1234 = vadd.f32 %v1233, %v1203
        %v1235 = vadd.f32 %v1234, %v1204
        %v1236 = vadd.f32 %v1235, %v1205
        %v1237 = vadd.f32 %v1236, %v1206
        %v1238 = vadd.f32 %v1237, %v1207
        %v1239 = vadd.f32 %v1238, %v1208
        %v1240 = vadd.f32 %v1239, %v1209
        %v1241 = vrot.slane %v1240, 4
        %v1242 = vadd.f32 %v1240, %v1241
        %v1243 = vrot.slane %v1242, 2
        %v1244 = vadd.f32 %v1242, %v1243
        %v1245 = vrot.slane %v1244, 1
        %v1246 = vadd.f32 %v1244, %v1245
        %1247 = vst [vmem:[%s219] sm:$0xff] %v1177
        %1248 = vst [vmem:[%s226] sm:$0xff] %v1246
        %s1249 = sand.u32 %s91, 1
        %s1250 = scalar_lea.sflag [#allocation3], %s1249
        %s1251 = sand.u32 %s91, 1
        %s1252 = smul.addr %s1251, 128
        %s1253 = scalar_lea.vmem [#allocation2], %s1252
        %s1254 = sand.u32 %s22, 1
        %s1255 = scalar_lea.sflag [#allocation5], %s1254
        %s1256 = sand.u32 %s119, 1
        %s1257 = smul.addr %s1256, 8
        %s1258 = scalar_lea.vmem [#allocation4], %s1257
        %s1259 = sand.u32 %s22, 1
        %s1260 = scalar_lea.sflag [#allocation5], %s1259
        %s1261 = sand.u32 %s147, 1
        %s1262 = smul.addr %s1261, 8
        %s1263 = scalar_lea.vmem [#allocation6], %s1262
        // Predicated region
        $region29: #{tpu_custom_call.1} parent=27 // pred_check
          %p1264 = pneg %p101
        $region30: #{tpu_custom_call.1} parent=27 // pred_check_branch
          %1266 = sbr.rel (%p1264) target = $region32
        $region31: #{tpu_custom_call.1} parent=27 // pred_region
          %s1267 = smul.u32 32, %s27
          %1269 = vsyncadd %s1250, 0
          %s1270 = smul.addr %s26, 32
          %s1271 = sadd.s32 %s1267, %s1270
          %s1272 = smul.addr %s1271, 4
          %s1273 = scalar_lea.hbm %s2, %s1272
          %s1274 = sshll.u32 %s1253, 4
          %s1275 = int_to_ptr.vmem [resolvable:$true] %s1274
          %s1276 = sshll.u32 %s1273, 4
          %s1277 = int_to_ptr.hbm [resolvable:$true] %s1276
          %1282 = dma.vmem_to_hbm [thread:$0]  %s1275, 2048, %s1277, %s1250, 64, 64, 4
        $region32: #{tpu_custom_call.1} parent=27 // pred_fallthru
          _
        // Predicated region
        $region33: #{tpu_custom_call.1} parent=27 // pred_check
          %p1283 = pneg %p129
        $region34: #{tpu_custom_call.1} parent=27 // pred_check_branch
          %1285 = sbr.rel (%p1283) target = $region36
        $region35: #{tpu_custom_call.1} parent=27 // pred_region
          %1287 = vsyncadd %s1255, 0
          %s1288 = sadd.s32 %s27, %s26
          %s1289 = smul.addr %s1288, 8
          %s1290 = scalar_lea.hbm %s3, %s1289
          %s1292 = sshll.u32 %s1258, 4
          %s1293 = int_to_ptr.vmem [resolvable:$true] %s1292
          %s1294 = sshll.u32 %s1290, 4
          %s1295 = int_to_ptr.hbm [resolvable:$true] %s1294
          %1297 = dma.vmem_to_hbm [thread:$0]  %s1293, 128, %s1295, %s1255
        $region36: #{tpu_custom_call.1} parent=27 // pred_fallthru
          _
        // Predicated region
        $region37: #{tpu_custom_call.1} parent=27 // pred_check
          %p1298 = pneg %p157
        $region38: #{tpu_custom_call.1} parent=27 // pred_check_branch
          %1300 = sbr.rel (%p1298) target = $region40
        $region39: #{tpu_custom_call.1} parent=27 // pred_region
          %1302 = vsyncadd %s1260, 0
          %s1303 = sadd.s32 %s27, %s26
          %s1304 = smul.addr %s1303, 8
          %s1305 = scalar_lea.hbm %s4, %s1304
          %s1307 = sshll.u32 %s1263, 4
          %s1308 = int_to_ptr.vmem [resolvable:$true] %s1307
          %s1309 = sshll.u32 %s1305, 4
          %s1310 = int_to_ptr.hbm [resolvable:$true] %s1309
          %1312 = dma.vmem_to_hbm [thread:$0]  %s1308, 128, %s1310, %s1260
        $region40: #{tpu_custom_call.1} parent=27 // pred_fallthru
          _
      $region28: #{tpu_custom_call.1} parent=5 // pred_fallthru
        _
      %p1313 = scmp.le.s32.totalorder 2, %s17
      // Predicated region
      $region41: #{tpu_custom_call.1} parent=5 // pred_check
        %p1314 = pneg %p1313
      $region42: #{tpu_custom_call.1} parent=5 // pred_check_branch
        %1316 = sbr.rel (%p1314) target = $region44
      $region43: #{tpu_custom_call.1} parent=5 // pred_region
        %s1317 = ssub.s32 %s17, 2
        // Predicated region
        $region45: #{tpu_custom_call.1} parent=43 // pred_check
          %p1318 = pneg %p107
        $region46: #{tpu_custom_call.1} parent=43 // pred_check_branch
          %1320 = sbr.rel (%p1318) target = $region48
        $region47: #{tpu_custom_call.1} parent=43 // pred_region
          %s1321 = sand.u32 %s92, 1
          %s1322 = scalar_lea.sflag [#allocation3], %s1321
          %s1323 = sand.u32 %s92, 1
          %s1324 = smul.addr %s1323, 128
          %s1325 = scalar_lea.vmem [#allocation2], %s1324
          %1327 = dma.done %s1322, 2048
        $region48: #{tpu_custom_call.1} parent=43 // pred_fallthru
          _
        // Predicated region
        $region49: #{tpu_custom_call.1} parent=43 // pred_check
          %p1328 = pneg %p135
        $region50: #{tpu_custom_call.1} parent=43 // pred_check_branch
          %1330 = sbr.rel (%p1328) target = $region52
        $region51: #{tpu_custom_call.1} parent=43 // pred_region
          %s1331 = sand.u32 %s23, 1
          %s1332 = scalar_lea.sflag [#allocation5], %s1331
          %s1333 = sand.u32 %s120, 1
          %s1334 = smul.addr %s1333, 8
          %s1335 = scalar_lea.vmem [#allocation4], %s1334
          %1337 = dma.done %s1332, 128
        $region52: #{tpu_custom_call.1} parent=43 // pred_fallthru
          _
        // Predicated region
        $region53: #{tpu_custom_call.1} parent=43 // pred_check
          %p1338 = pneg %p163
        $region54: #{tpu_custom_call.1} parent=43 // pred_check_branch
          %1340 = sbr.rel (%p1338) target = $region56
        $region55: #{tpu_custom_call.1} parent=43 // pred_region
          %s1341 = sand.u32 %s23, 1
          %s1342 = scalar_lea.sflag [#allocation5], %s1341
          %s1343 = sand.u32 %s148, 1
          %s1344 = smul.addr %s1343, 8
          %s1345 = scalar_lea.vmem [#allocation6], %s1344
          %1347 = dma.done %s1342, 128
        $region56: #{tpu_custom_call.1} parent=43 // pred_fallthru
          _
      $region44: #{tpu_custom_call.1} parent=5 // pred_fallthru
        _
    $region6: #{tpu_custom_call.1} parent=1 // loop_footer
      %s21 = sadd.s32 1, %s17
    $region7: #{tpu_custom_call.1} parent=1 // loop_footer_branch
      %16 = sbr.rel target = $region3
    $region8: #{tpu_custom_call.1} parent=1 // loop_exit
      _
    %1348 = vsyncpa [#allocation3], 1
    %s1349 = scalar_lea.sflag [#allocation3], 1
    %1350 = vsyncpa %s1349, 1
    %1351 = vsyncpa [#allocation5], 1
    %s1352 = scalar_lea.sflag [#allocation5], 1
    %1353 = vsyncpa %s1352, 1

</llo_original>
